<compile_context>
chip_gen: v7x
topology: tpu7x:2x2x1
jax: 0.10.0
libtpu: 0.0.40
codegen_flags: <defaults>
</compile_context>

<pallas_src>
import jax
import jax.numpy as jnp
from jax import lax
from jax.experimental import pallas as pl
from jax.experimental.pallas import tpu as pltpu


def _pick_b_tile(B):
    # Multiples of 8 keep the (b_tile, N) output store sublane-full; prefer
    # >=2 batch tiles so v7x's two TensorCores both get work, and grow the
    # tile for large batches to amortize the ~0.35us per-grid-step overhead.
    for t in (64, 32, 16, 8):
        if B % t == 0 and B // t >= 2:
            return t
    if B % 8 == 0:
        return 8
    return B  # tiny / odd batch: single full-batch tile (block == full dim)


def _make_kernel(b_tile, inv_hw):
    def kernel(x_ref, ws_ref, wc_ref, bc_ref, o_ref, acc_ref):
        hw_step = pl.program_id(1)

        @pl.when(hw_step == 0)
        def _init():
            acc_ref[...] = jnp.zeros_like(acc_ref)

        ws = ws_ref[...]                                   # (Cin, Cfeat) bf16
        for b in range(b_tile):                            # small static unroll
            xb = x_ref[b]                                  # (Cin, hw_tile) bf16
            # Backbone stand-in: 1x1 conv. Transposed-LHS bf16 MXU matmul with
            # f32 accumulate; keeps Cfeat on the lane axis.
            feat = lax.dot_general(
                xb, ws, (((0,), (0,)), ((), ())),
                preferred_element_type=jnp.float32)        # (hw_tile, Cfeat) f32
            # SiLU via a single EUP op: x*sigmoid(x) == 0.5*x*(tanh(x/2)+1).
            feat = 0.5 * feat * (jnp.tanh(0.5 * feat) + 1.0)
            # Partial spatial sum for AdaptiveAvgPool2d(1); store the row
            # immediately (f32 accumulation, feat live range ends here).
            acc_ref[pl.ds(b, 1), :] += jnp.sum(feat, axis=0, keepdims=True)

        @pl.when(hw_step == pl.num_programs(1) - 1)
        def _finalize():
            pooled = acc_ref[...] * inv_hw                 # mean over true HW
            # Final nn.Linear head (metric='softmax'): lane-dense (b_tile, N).
            logits = jnp.dot(pooled.astype(jnp.bfloat16), wc_ref[...],
                             preferred_element_type=jnp.float32)
            o_ref[...] = (logits + bc_ref[...]).astype(o_ref.dtype)

    return kernel


def model_forward(x_nchw, label, w_stem, w_cls, b_cls, *, hw_tile=None):
    """x_nchw: (B, Cin, H, W) f32. label: unused (softmax head).
    w_stem: (Cin, Cfeat), w_cls: (Cfeat, N), b_cls: (N,). Returns (B, N) f32."""
    del label  # metric='softmax': final(feature), label not consumed
    B, Cin, H, W = x_nchw.shape
    HW = H * W
    Cfeat = w_stem.shape[1]
    N = w_cls.shape[1]

    b_tile = _pick_b_tile(B)

    if hw_tile is None:
        # Cap at 512 (v7x 64MiB-VMEM-safe at Cfeat~1536), floor at one lane tile.
        hw_tile = min(512, max(128, ((HW + 127) // 128) * 128))
    hw_pad = ((HW + hw_tile - 1) // hw_tile) * hw_tile
    n_pad = ((N + 127) // 128) * 128

    # NCHW read directly: reshape is free; HW lands on the 128-lane axis.
    x = x_nchw.astype(jnp.bfloat16).reshape(B, Cin, HW)
    if hw_pad != HW:
        # Zero padding is exact: 0 through the stem stays 0 after SiLU, and the
        # pooled mean divides by the true HW inside the kernel.
        x = jnp.pad(x, ((0, 0), (0, 0), (0, hw_pad - HW)))

    ws = w_stem.astype(jnp.bfloat16)          # stem weight, bf16 MXU operand
    wc = w_cls.astype(jnp.bfloat16)           # classifier weight, bf16
    bc = b_cls.astype(jnp.float32)
    if n_pad != N:
        wc = jnp.pad(wc, ((0, 0), (0, n_pad - N)))
        bc = jnp.pad(bc, ((0, n_pad - N),))
    bc = bc.reshape(1, n_pad)

    kernel = _make_kernel(b_tile, 1.0 / HW)

    out = pl.pallas_call(
        kernel,
        out_shape=jax.ShapeDtypeStruct((B, n_pad), jnp.float32),
        grid_spec=pltpu.PrefetchScalarGridSpec(
            num_scalar_prefetch=0,
            grid=(B // b_tile, hw_pad // hw_tile),     # HW (reduction) axis last
            in_specs=[
                pl.BlockSpec((b_tile, Cin, hw_tile), lambda b, h: (b, 0, h)),
                pl.BlockSpec((Cin, Cfeat), lambda b, h: (0, 0)),
                pl.BlockSpec((Cfeat, n_pad), lambda b, h: (0, 0)),
                pl.BlockSpec((1, n_pad), lambda b, h: (0, 0)),
            ],
            out_specs=pl.BlockSpec((b_tile, n_pad), lambda b, h: (b, 0)),
            scratch_shapes=[pltpu.VMEM((b_tile, Cfeat), jnp.float32)],
        ),
        compiler_params=pltpu.CompilerParams(
            dimension_semantics=("parallel", "arbitrary"),
            vmem_limit_bytes=32 * 1024 * 1024,
        ),
    )(x, ws, wc, bc)

    if n_pad != N:
        out = out[:, :N]
    return out


def _reference(x_nchw, w_stem, w_cls, b_cls):
    """Pure-JAX reference with the same bf16 quantization points as the kernel."""
    B, Cin, H, W = x_nchw.shape
    x = x_nchw.astype(jnp.bfloat16).astype(jnp.float32).reshape(B, Cin, H * W)
    ws = w_stem.astype(jnp.bfloat16).astype(jnp.float32)
    feat = jnp.einsum("bch,cf->bhf", x, ws, precision=lax.Precision.HIGHEST)
    feat = 0.5 * feat * (jnp.tanh(0.5 * feat) + 1.0)   # SiLU (tanh form)
    pooled = jnp.mean(feat, axis=1)                    # AdaptiveAvgPool2d + view
    wc = w_cls.astype(jnp.bfloat16).astype(jnp.float32)
    logits = jnp.dot(pooled.astype(jnp.bfloat16).astype(jnp.float32), wc,
                     precision=lax.Precision.HIGHEST) + b_cls[None, :]
    return logits


if __name__ == "__main__":
    # Small, deterministic shapes
    B, Cin, H, W = 2, 4, 16, 16      # input images (NCHW)
    Cfeat = 256                      # backbone feature channels (stand-in for 1536)
    N = 128                          # n_classes (stand-in for 1000)

    key = jax.random.PRNGKey(0)
    kx, kws, kwc, kb = jax.random.split(key, 4)

    x = jax.random.normal(kx, (B, Cin, H, W), dtype=jnp.float32)
    label = jnp.zeros((B,), dtype=jnp.int32)           # unused by softmax head

    w_stem = jax.random.normal(kws, (Cin, Cfeat), dtype=jnp.float32) * (1.0 / Cin) ** 0.5
    w_cls = jax.random.normal(kwc, (Cfeat, N), dtype=jnp.float32) * (1.0 / Cfeat) ** 0.5
    b_cls = jax.random.normal(kb, (N,), dtype=jnp.float32) * 0.01

    # hw_tile=128 -> 2 reduction steps over HW, exercising the fused-pool
    # accumulator (init / finalize) path.
    logits = jax.block_until_ready(
        model_forward(x, label, w_stem, w_cls, b_cls, hw_tile=128))

    ref = _reference(x, w_stem, w_cls, b_cls)
    assert logits.shape == (B, N)
    assert jnp.allclose(logits, ref, atol=1e-2, rtol=1e-2), (
        "mismatch vs reference, max abs diff = "
        + str(float(jnp.max(jnp.abs(logits - ref)))))

    print("KERNEL_OK")
</pallas_src>

<mosaic_0001>
module attributes {stable_mosaic.version = 11 : i64} {
  func.func @kernel(%arg0: i32, %arg1: i32, %arg2: memref<2x4x128xbf16, #tpu.memory_space<vmem>>, %arg3: memref<4x256xbf16, #tpu.memory_space<vmem>>, %arg4: memref<256x128xbf16, #tpu.memory_space<vmem>>, %arg5: memref<1x128xf32, #tpu.memory_space<vmem>>, %arg6: memref<2x128xf32, #tpu.memory_space<vmem>>, %arg7: memref<2x256xf32, #tpu.memory_space<vmem>>) attributes {dimension_semantics = [#tpu.dimension_semantics<parallel>, #tpu.dimension_semantics<arbitrary>], iteration_bounds = array<i64: 1, 2>, scalar_prefetch = 0 : i64, scratch_operands = 1 : i64, tpu.core_type = #tpu.core_type<tc>, window_params = [{transform_indices = @transform_0, window_bounds = array<i64: 2, 4, 128>}, {pipeline_mode = #tpu.pipeline_mode<synchronous>, transform_indices = @transform_1, window_bounds = array<i64: 4, 256>}, {pipeline_mode = #tpu.pipeline_mode<synchronous>, transform_indices = @transform_2, window_bounds = array<i64: 256, 128>}, {pipeline_mode = #tpu.pipeline_mode<synchronous>, transform_indices = @transform_3, window_bounds = array<i64: 1, 128>}, {transform_indices = @transform_4, window_bounds = array<i64: 2, 128>}]} {
    %c0_i32 = arith.constant 0 : i32
    %0 = arith.cmpi eq, %arg1, %c0_i32 : i32
    %1 = arith.extui %0 : i1 to i32
    %c0_i32_0 = arith.constant 0 : i32
    %2 = arith.cmpi ne, %1, %c0_i32_0 : i32
    scf.if %2 {
      %cst_25 = arith.constant 0.000000e+00 : f32
      %39 = vector.broadcast %cst_25 : f32 to vector<2x256xf32>
      %c0_26 = arith.constant 0 : index
      %c0_27 = arith.constant 0 : index
      %40 = vector.load %arg7[%c0_26, %c0_27] : memref<2x256xf32, #tpu.memory_space<vmem>>, vector<2x256xf32>
      tpu.vector_store %arg7[%c0_26, %c0_27], %39 {strides = array<i32>} : memref<2x256xf32, #tpu.memory_space<vmem>>, vector<2x256xf32>,
    } else {
    }
    %c0 = arith.constant 0 : index
    %c0_1 = arith.constant 0 : index
    %3 = vector.load %arg3[%c0, %c0_1] : memref<4x256xbf16, #tpu.memory_space<vmem>>, vector<4x256xbf16>
    %c0_2 = arith.constant 0 : index
    %c0_3 = arith.constant 0 : index
    %c0_4 = arith.constant 0 : index
    %4 = vector.load %arg2[%c0_2, %c0_3, %c0_4] : memref<2x4x128xbf16, #tpu.memory_space<vmem>>, vector<1x4x128xbf16>
    %5 = vector.shape_cast %4 : vector<1x4x128xbf16> to vector<4x128xbf16>
    %cst = arith.constant dense<0.000000e+00> : vector<128x256xf32>
    %6 = tpu.matmul %5, %3, %cst {dimension_numbers = #tpu.dot_dimension_numbers<[0], [0], [1], [1], [0, 1, 1, 1], [], []>} : vector<4x128xbf16>, vector<4x256xbf16>, vector<128x256xf32> -> vector<128x256xf32>
    %cst_5 = arith.constant 5.000000e-01 : f32
    %7 = vector.broadcast %cst_5 : f32 to vector<128x256xf32>
    %8 = arith.mulf %7, %6 : vector<128x256xf32>
    %cst_6 = arith.constant 5.000000e-01 : f32
    %9 = vector.broadcast %cst_6 : f32 to vector<128x256xf32>
    %10 = arith.mulf %9, %6 : vector<128x256xf32>
    %11 = math.tanh %10 : vector<128x256xf32>
    %cst_7 = arith.constant 1.000000e+00 : f32
    %12 = vector.broadcast %cst_7 : f32 to vector<128x256xf32>
    %13 = arith.addf %11, %12 : vector<128x256xf32>
    %14 = arith.mulf %8, %13 : vector<128x256xf32>
    %c0_8 = arith.constant 0 : index
    %c0_9 = arith.constant 0 : index
    %15 = vector.load %arg7[%c0_8, %c0_9] : memref<2x256xf32, #tpu.memory_space<vmem>>, vector<1x256xf32>
    %cst_10 = arith.constant dense<0.000000e+00> : vector<256xf32>
    %16 = vector.multi_reduction <add>, %14, %cst_10 [0] : vector<128x256xf32> to vector<256xf32>
    %17 = vector.shape_cast %16 : vector<256xf32> to vector<1x256xf32>
    %18 = arith.addf %15, %17 : vector<1x256xf32>
    %c0_11 = arith.constant 0 : index
    %c0_12 = arith.constant 0 : index
    %19 = vector.load %arg7[%c0_11, %c0_12] : memref<2x256xf32, #tpu.memory_space<vmem>>, vector<1x256xf32>
    tpu.vector_store %arg7[%c0_11, %c0_12], %18 {strides = array<i32>} : memref<2x256xf32, #tpu.memory_space<vmem>>, vector<1x256xf32>,
    %c1 = arith.constant 1 : index
    %c0_13 = arith.constant 0 : index
    %c0_14 = arith.constant 0 : index
    %20 = vector.load %arg2[%c1, %c0_13, %c0_14] : memref<2x4x128xbf16, #tpu.memory_space<vmem>>, vector<1x4x128xbf16>
    %21 = vector.shape_cast %20 : vector<1x4x128xbf16> to vector<4x128xbf16>
    %cst_15 = arith.constant dense<0.000000e+00> : vector<128x256xf32>
    %22 = tpu.matmul %21, %3, %cst_15 {dimension_numbers = #tpu.dot_dimension_numbers<[0], [0], [1], [1], [0, 1, 1, 1], [], []>} : vector<4x128xbf16>, vector<4x256xbf16>, vector<128x256xf32> -> vector<128x256xf32>
    %cst_16 = arith.constant 5.000000e-01 : f32
    %23 = vector.broadcast %cst_16 : f32 to vector<128x256xf32>
    %24 = arith.mulf %23, %22 : vector<128x256xf32>
    %cst_17 = arith.constant 5.000000e-01 : f32
    %25 = vector.broadcast %cst_17 : f32 to vector<128x256xf32>
    %26 = arith.mulf %25, %22 : vector<128x256xf32>
    %27 = math.tanh %26 : vector<128x256xf32>
    %cst_18 = arith.constant 1.000000e+00 : f32
    %28 = vector.broadcast %cst_18 : f32 to vector<128x256xf32>
    %29 = arith.addf %27, %28 : vector<128x256xf32>
    %30 = arith.mulf %24, %29 : vector<128x256xf32>
    %c1_19 = arith.constant 1 : index
    %c0_20 = arith.constant 0 : index
    %31 = vector.load %arg7[%c1_19, %c0_20] : memref<2x256xf32, #tpu.memory_space<vmem>>, vector<1x256xf32>
    %cst_21 = arith.constant dense<0.000000e+00> : vector<256xf32>
    %32 = vector.multi_reduction <add>, %30, %cst_21 [0] : vector<128x256xf32> to vector<256xf32>
    %33 = vector.shape_cast %32 : vector<256xf32> to vector<1x256xf32>
    %34 = arith.addf %31, %33 : vector<1x256xf32>
    %c1_22 = arith.constant 1 : index
    %c0_23 = arith.constant 0 : index
    %35 = vector.load %arg7[%c1_22, %c0_23] : memref<2x256xf32, #tpu.memory_space<vmem>>, vector<1x256xf32>
    tpu.vector_store %arg7[%c1_22, %c0_23], %34 {strides = array<i32>} : memref<2x256xf32, #tpu.memory_space<vmem>>, vector<1x256xf32>,
    %c1_i32 = arith.constant 1 : i32
    %36 = arith.cmpi eq, %arg1, %c1_i32 : i32
    %37 = arith.extui %36 : i1 to i32
    %c0_i32_24 = arith.constant 0 : i32
    %38 = arith.cmpi ne, %37, %c0_i32_24 : i32
    scf.if %38 {
      %c0_25 = arith.constant 0 : index
      %c0_26 = arith.constant 0 : index
      %39 = vector.load %arg7[%c0_25, %c0_26] : memref<2x256xf32, #tpu.memory_space<vmem>>, vector<2x256xf32>
      %cst_27 = arith.constant 3.906250e-03 : f32
      %40 = vector.broadcast %cst_27 : f32 to vector<2x256xf32>
      %41 = arith.mulf %39, %40 : vector<2x256xf32>
      %42 = arith.truncf %41 : vector<2x256xf32> to vector<2x256xbf16>
      %c0_28 = arith.constant 0 : index
      %c0_29 = arith.constant 0 : index
      %43 = vector.load %arg4[%c0_28, %c0_29] : memref<256x128xbf16, #tpu.memory_space<vmem>>, vector<256x128xbf16>
      %cst_30 = arith.constant dense<0.000000e+00> : vector<2x128xf32>
      %44 = tpu.matmul %42, %43, %cst_30 {dimension_numbers = #tpu.dot_dimension_numbers<[1], [0], [0], [1], [0, 0, 1, 1], [], []>} : vector<2x256xbf16>, vector<256x128xbf16>, vector<2x128xf32> -> vector<2x128xf32>
      %c0_31 = arith.constant 0 : index
      %c0_32 = arith.constant 0 : index
      %45 = vector.load %arg5[%c0_31, %c0_32] : memref<1x128xf32, #tpu.memory_space<vmem>>, vector<1x128xf32>
      %46 = vector.broadcast %45 : vector<1x128xf32> to vector<2x128xf32>
      %47 = arith.addf %44, %46 : vector<2x128xf32>
      %c0_33 = arith.constant 0 : index
      %c0_34 = arith.constant 0 : index
      %48 = vector.load %arg6[%c0_33, %c0_34] : memref<2x128xf32, #tpu.memory_space<vmem>>, vector<2x128xf32>
      tpu.vector_store %arg6[%c0_33, %c0_34], %47 {strides = array<i32>} : memref<2x128xf32, #tpu.memory_space<vmem>>, vector<2x128xf32>,
    } else {
    }
    return
  }
  func.func @transform_0(%arg0: i32, %arg1: i32) -> (i32, i32, i32) {
    %c0_i32 = arith.constant 0 : i32
    %c0_i32_0 = arith.constant 0 : i32
    return %arg0, %c0_i32, %arg1 : i32, i32, i32
  }
  func.func @transform_1(%arg0: i32, %arg1: i32) -> (i32, i32) {
    %c0_i32 = arith.constant 0 : i32
    %c0_i32_0 = arith.constant 0 : i32
    %c0_i32_1 = arith.constant 0 : i32
    return %c0_i32, %c0_i32_0 : i32, i32
  }
  func.func @transform_2(%arg0: i32, %arg1: i32) -> (i32, i32) {
    %c0_i32 = arith.constant 0 : i32
    %c0_i32_0 = arith.constant 0 : i32
    %c0_i32_1 = arith.constant 0 : i32
    return %c0_i32, %c0_i32_0 : i32, i32
  }
  func.func @transform_3(%arg0: i32, %arg1: i32) -> (i32, i32) {
    %c0_i32 = arith.constant 0 : i32
    %c0_i32_0 = arith.constant 0 : i32
    %c0_i32_1 = arith.constant 0 : i32
    return %c0_i32, %c0_i32_0 : i32, i32
  }
  func.func @transform_4(%arg0: i32, %arg1: i32) -> (i32, i32) {
    %c0_i32 = arith.constant 0 : i32
    %c0_i32_0 = arith.constant 0 : i32
    return %arg0, %c0_i32 : i32, i32
  }
}

</mosaic_0001>

<llo_original>
// kernel: tpu_custom_call.1
$region0: #{tpu_custom_call.1}
  #allocation0 [shape = 'u32[]', space=smem, size = 0x4, offset = 0x4, fixed_abs, tag = 'smem constant byte address 0x4 - core index']
  #allocation1 [shape = 'u32[144,128]{1,0:T(1,128)}', space=vmem, size = 0x12000, scoped, tag = 'internal scratch']
  #allocation2 [shape = 'f32[2,256]{1,0:T(2,128)}', space=vmem, size = 0x800, scoped, tag = 'scratch operand']
  %s0 = inlined_call_operand.hbm [shape: bf16[2,4,256], index: 0, kind: input, shape index: {}]
  %s1 = inlined_call_operand.hbm [shape: bf16[4,256], index: 1, kind: input, shape index: {}]
  %s2 = inlined_call_operand.hbm [shape: bf16[256,128], index: 2, kind: input, shape index: {}]
  %s3 = inlined_call_operand.vmem [shape: f32[1,128], index: 3, kind: input, shape index: {}]
  %s4 = inlined_call_operand.hbm [shape: f32[2,128], index: 4, kind: output, shape index: {}]
  %s5 = sld [smem:[#allocation0]]
  $region69: #{tpu_custom_call.1} parent=0
    _
  %s7 = ssub.s32 1, %s5
  %s8 = scalar_select 0, %s7, %s5
  $region1: #{tpu_custom_call.1} parent=0
    #allocation3 [shape = 'u8[4096]{0}', space=vmem, size = 0x1000, scoped, tag = 'input window, operand 0']
    #allocation4 [shape = 's32[2]{0}', space=sflag, size = 0x8, scoped, tag = 'scoped memory for tpu_custom_call.1']
    #allocation5 [shape = 's32[2]{0}', space=sflag, size = 0x8, scoped, tag = 'scoped memory for tpu_custom_call.1']
    #allocation6 [shape = 'u8[2048]{0}', space=vmem, size = 0x800, scoped, tag = 'input window, operand 1, single buffered']
    #allocation7 [shape = 's32[1]{0}', space=sflag, size = 0x4, scoped, tag = 'scoped memory for tpu_custom_call.1']
    #allocation8 [shape = 'u8[65536]{0}', space=vmem, size = 0x10000, scoped, tag = 'input window, operand 2, single buffered']
    #allocation9 [shape = 'u8[1024]{0}', space=vmem, size = 0x400, scoped, tag = 'output window, operand 0, single buffered']
    %9 = vsyncpa [#allocation4], 0
    %s10 = scalar_lea.sflag [#allocation4], 1
    %11 = vsyncpa %s10, 0
    %12 = vsyncpa [#allocation7], 0
    %13 = vsyncpa [#allocation5], 0
    loop: start=0, step=1, limit=4
    $region2: #{tpu_custom_call.1} parent=1 // loop_pre_header
      _
    $region3: #{tpu_custom_call.1} parent=1 // loop_header
      %s15 = sphi 0, %s19
      %p16 = scmp.ge.s32.totalorder %s15, 4
      %s22 = sphi 0, %s34
      %s23 = sphi 0, %s30
      %s24 = sphi 0, %s22
      %s25 = sphi 0, %s23
      %s26 = sphi 0, %s24
      %s27 = sphi 0, %s25
      %s39 = sphi 0, %s41
      %s42 = sphi 0, %s39
      %s43 = sphi 0, %s42
      %s59 = sphi 0, %s43
      %s63 = sphi 0, %s63
      %s65 = sphi 0, %s63
      %s66 = sphi 0, %s65
      %s80 = sphi 0, %s66
      %s84 = sphi 0, %s84
      %s86 = sphi 0, %s84
      %s87 = sphi 0, %s86
      %s101 = sphi 0, %s87
      %s105 = sphi 0, %s105
      %s107 = sphi 0, %s105
      %s108 = sphi 0, %s107
      %s122 = sphi 0, %s108
      %s128 = sphi 0, %s130
      %s131 = sphi 0, %s128
      %s132 = sphi 0, %s131
      %s148 = sphi 0, %s132
    $region4: #{tpu_custom_call.1} parent=1 // loop_header_branch
      %18 = sbr.rel (%p16) target = $region8
    $region5: #{tpu_custom_call.1} parent=1 // loop_body
      %s20 = ssub.s32 %s15, 1
      %s21 = ssub.s32 %s15, 2
      %s28 = sadd.s32 1, %s23
      %p29 = scmp.ge.s32.totalorder %s28, 2
      %s30 = scalar_select %p29, 0, %s28
      %s31 = sadd.s32 1, %s22
      %s32 = scalar_select %p29, %s31, %s22
      %p33 = scmp.ge.s32.totalorder %s32, 1
      %s34 = scalar_select %p33, 0, %s32
      %s35 = ssub.s32 %s22, %s34
      %s36 = ssub.s32 %s23, %s30
      %s37 = sor.u32 %s35, %s36
      %p38 = scmp.eq.s32.totalorder %s37, 0
      %s40 = sadd.s32 %s39, 1
      %s41 = scalar_select %p38, %s39, %s40
      %p44 = pneg %p38
      %p45 = scmp.eq.s32.totalorder %s15, 1
      %p46 = por %p44, %p45
      %p47 = scmp.ne.s32.totalorder %s39, %s42
      %p48 = scmp.eq.s32.totalorder %s15, 0
      %p49 = por %p47, %p48
      %p50 = scmp.ne.s32.totalorder %s39, %s42
      %p51 = scmp.eq.s32.totalorder %s20, 1
      %p52 = por %p50, %p51
      %p53 = scmp.ne.s32.totalorder %s42, %s43
      %p54 = scmp.eq.s32.totalorder %s20, 0
      %p55 = por %p53, %p54
      %p56 = scmp.ne.s32.totalorder %s42, %s43
      %p57 = scmp.eq.s32.totalorder %s21, 1
      %p58 = por %p56, %p57
      %p60 = scmp.ne.s32.totalorder %s43, %s59
      %p61 = scmp.eq.s32.totalorder %s21, 0
      %p62 = por %p60, %p61
      %s64 = sadd.s32 %s63, 1
      %p67 = scmp.eq.s32.totalorder %s15, 1
      %p68 = scmp.ne.s32.totalorder %s63, %s65
      %p69 = scmp.eq.s32.totalorder %s15, 0
      %p70 = por %p68, %p69
      %p71 = scmp.ne.s32.totalorder %s63, %s65
      %p72 = scmp.eq.s32.totalorder %s20, 1
      %p73 = por %p71, %p72
      %p74 = scmp.ne.s32.totalorder %s65, %s66
      %p75 = scmp.eq.s32.totalorder %s20, 0
      %p76 = por %p74, %p75
      %p77 = scmp.ne.s32.totalorder %s65, %s66
      %p78 = scmp.eq.s32.totalorder %s21, 1
      %p79 = por %p77, %p78
      %p81 = scmp.ne.s32.totalorder %s66, %s80
      %p82 = scmp.eq.s32.totalorder %s21, 0
      %p83 = por %p81, %p82
      %s85 = sadd.s32 %s84, 1
      %p88 = scmp.eq.s32.totalorder %s15, 1
      %p89 = scmp.ne.s32.totalorder %s84, %s86
      %p90 = scmp.eq.s32.totalorder %s15, 0
      %p91 = por %p89, %p90
      %p92 = scmp.ne.s32.totalorder %s84, %s86
      %p93 = scmp.eq.s32.totalorder %s20, 1
      %p94 = por %p92, %p93
      %p95 = scmp.ne.s32.totalorder %s86, %s87
      %p96 = scmp.eq.s32.totalorder %s20, 0
      %p97 = por %p95, %p96
      %p98 = scmp.ne.s32.totalorder %s86, %s87
      %p99 = scmp.eq.s32.totalorder %s21, 1
      %p100 = por %p98, %p99
      %p102 = scmp.ne.s32.totalorder %s87, %s101
      %p103 = scmp.eq.s32.totalorder %s21, 0
      %p104 = por %p102, %p103
      %s106 = sadd.s32 %s105, 1
      %p109 = scmp.eq.s32.totalorder %s15, 1
      %p110 = scmp.ne.s32.totalorder %s105, %s107
      %p111 = scmp.eq.s32.totalorder %s15, 0
      %p112 = por %p110, %p111
      %p113 = scmp.ne.s32.totalorder %s105, %s107
      %p114 = scmp.eq.s32.totalorder %s20, 1
      %p115 = por %p113, %p114
      %p116 = scmp.ne.s32.totalorder %s107, %s108
      %p117 = scmp.eq.s32.totalorder %s20, 0
      %p118 = por %p116, %p117
      %p119 = scmp.ne.s32.totalorder %s107, %s108
      %p120 = scmp.eq.s32.totalorder %s21, 1
      %p121 = por %p119, %p120
      %p123 = scmp.ne.s32.totalorder %s108, %s122
      %p124 = scmp.eq.s32.totalorder %s21, 0
      %p125 = por %p123, %p124
      %s126 = ssub.s32 %s22, %s34
      %p127 = scmp.eq.s32.totalorder %s126, 0
      %s129 = sadd.s32 %s128, 1
      %s130 = scalar_select %p127, %s128, %s129
      %p133 = pneg %p127
      %p134 = scmp.eq.s32.totalorder %s15, 1
      %p135 = por %p133, %p134
      %p136 = scmp.ne.s32.totalorder %s128, %s131
      %p137 = scmp.eq.s32.totalorder %s15, 0
      %p138 = por %p136, %p137
      %p139 = scmp.ne.s32.totalorder %s128, %s131
      %p140 = scmp.eq.s32.totalorder %s20, 1
      %p141 = por %p139, %p140
      %p142 = scmp.ne.s32.totalorder %s131, %s132
      %p143 = scmp.eq.s32.totalorder %s20, 0
      %p144 = por %p142, %p143
      %p145 = scmp.ne.s32.totalorder %s131, %s132
      %p146 = scmp.eq.s32.totalorder %s21, 1
      %p147 = por %p145, %p146
      %p149 = scmp.ne.s32.totalorder %s132, %s148
      %p150 = scmp.eq.s32.totalorder %s21, 0
      %p151 = por %p149, %p150
      %p152 = scmp.le.s32.totalorder 1, %s15
      %p153 = scmp.lt.s32.totalorder %s15, 3
      %p154 = pnand %p152, %p153
      %p155 = pneg %p154
      // Predicated region
      $region9: #{tpu_custom_call.1} parent=5 // pred_check
        _
      $region10: #{tpu_custom_call.1} parent=5 // pred_check_branch
        %157 = sbr.rel (%p154) target = $region12
      $region11: #{tpu_custom_call.1} parent=5 // pred_region
        %s158 = ssub.s32 %s15, 1
        // Predicated region
        $region13: #{tpu_custom_call.1} parent=11 // pred_check
          %p159 = pneg %p76
        $region14: #{tpu_custom_call.1} parent=11 // pred_check_branch
          %161 = sbr.rel (%p159) target = $region16
        $region15: #{tpu_custom_call.1} parent=11 // pred_region
          %s163 = ssub.s32 64, 64
          %164 = vsyncadd [#allocation7], %s163
          %s166 = sshll.u32 [#allocation6], 4
          %s167 = int_to_ptr.vmem [resolvable:$true] %s166
          %169 = dma.hbm_to_vmem [thread:$0]  %s1, 64, %s167, [#allocation7]
        $region16: #{tpu_custom_call.1} parent=11 // pred_fallthru
          _
        // Predicated region
        $region17: #{tpu_custom_call.1} parent=11 // pred_check
          %p170 = pneg %p97
        $region18: #{tpu_custom_call.1} parent=11 // pred_check_branch
          %172 = sbr.rel (%p170) target = $region20
        $region19: #{tpu_custom_call.1} parent=11 // pred_region
          %s174 = ssub.s32 2048, 2048
          %175 = vsyncadd [#allocation7], %s174
          %s176 = sshll.u32 [#allocation8], 4
          %s177 = int_to_ptr.vmem [resolvable:$true] %s176
          %182 = dma.hbm_to_vmem [thread:$0]  %s2, 2048, %s177, [#allocation7], 64, 64, 4
        $region20: #{tpu_custom_call.1} parent=11 // pred_fallthru
          _
        // Predicated region
        $region21: #{tpu_custom_call.1} parent=11 // pred_check
          %p183 = pneg %p118
        $region22: #{tpu_custom_call.1} parent=11 // pred_check_branch
          %185 = sbr.rel (%p183) target = $region24
        $region23: #{tpu_custom_call.1} parent=11 // pred_region
          _
        $region24: #{tpu_custom_call.1} parent=11 // pred_fallthru
          _
      $region12: #{tpu_custom_call.1} parent=5 // pred_fallthru
        _
      %p186 = scmp.lt.s32.totalorder %s15, 2
      // Predicated region
      $region25: #{tpu_custom_call.1} parent=5 // pred_check
        %p187 = pneg %p186
      $region26: #{tpu_custom_call.1} parent=5 // pred_check_branch
        %189 = sbr.rel (%p187) target = $region28
      $region27: #{tpu_custom_call.1} parent=5 // pred_region
        // Predicated region
        $region29: #{tpu_custom_call.1} parent=27 // pred_check
          %p190 = pneg %p49
        $region30: #{tpu_custom_call.1} parent=27 // pred_check_branch
          %192 = sbr.rel (%p190) target = $region32
        $region31: #{tpu_custom_call.1} parent=27 // pred_region
          %s193 = sand.u32 %s39, 1
          %s194 = scalar_lea.sflag [#allocation4], %s193
          %s195 = sand.u32 %s39, 1
          %s196 = smul.addr %s195, 4
          %s197 = scalar_lea.vmem [#allocation3], %s196
          %s198 = smul.u32 2, %s22
          %s200 = ssub.s32 64, 64
          %201 = vsyncadd %s194, %s200
          %s202 = smul.addr %s198, 2
          %s203 = sadd.s32 %s23, %s202
          %s204 = smul.addr %s203, 32
          %s205 = scalar_lea.hbm %s0, %s204
          %s206 = sshll.u32 %s197, 4
          %s207 = int_to_ptr.vmem [resolvable:$true] %s206
          %212 = dma.hbm_to_vmem [thread:$0]  %s205, 64, %s207, %s194, 64, 32, 2
        $region32: #{tpu_custom_call.1} parent=27 // pred_fallthru
          _
      $region28: #{tpu_custom_call.1} parent=5 // pred_fallthru
        _
      %p213 = scmp.le.s32.totalorder 1, %s15
      %p214 = scmp.lt.s32.totalorder %s15, 3
      %p215 = pnand %p213, %p214
      %p216 = pneg %p215
      // Predicated region
      $region33: #{tpu_custom_call.1} parent=5 // pred_check
        _
      $region34: #{tpu_custom_call.1} parent=5 // pred_check_branch
        %218 = sbr.rel (%p215) target = $region36
      $region35: #{tpu_custom_call.1} parent=5 // pred_region
        %s219 = ssub.s32 %s15, 1
        %s220 = sand.u32 %s42, 1
        %s221 = scalar_lea.sflag [#allocation4], %s220
        %s222 = sand.u32 %s42, 1
        %s223 = smul.addr %s222, 4
        %s224 = scalar_lea.vmem [#allocation3], %s223
        // Predicated region
        $region37: #{tpu_custom_call.1} parent=35 // pred_check
          %p225 = pneg %p55
        $region38: #{tpu_custom_call.1} parent=35 // pred_check_branch
          %227 = sbr.rel (%p225) target = $region40
        $region39: #{tpu_custom_call.1} parent=35 // pred_region
          %228 = dma.done %s221, 64
        $region40: #{tpu_custom_call.1} parent=35 // pred_fallthru
          _
        // Predicated region
        $region41: #{tpu_custom_call.1} parent=35 // pred_check
          %p229 = pneg %p76
        $region42: #{tpu_custom_call.1} parent=35 // pred_check_branch
          %231 = sbr.rel (%p229) target = $region44
        $region43: #{tpu_custom_call.1} parent=35 // pred_region
          %232 = dma.done [#allocation7], 64
        $region44: #{tpu_custom_call.1} parent=35 // pred_fallthru
          _
        // Predicated region
        $region45: #{tpu_custom_call.1} parent=35 // pred_check
          %p233 = pneg %p97
        $region46: #{tpu_custom_call.1} parent=35 // pred_check_branch
          %235 = sbr.rel (%p233) target = $region48
        $region47: #{tpu_custom_call.1} parent=35 // pred_region
          %236 = dma.done [#allocation7], 2048
        $region48: #{tpu_custom_call.1} parent=35 // pred_fallthru
          _
        %s237 = sand.u32 %s42, 1
        %s238 = scalar_lea.sflag [#allocation4], %s237
        %s239 = sand.u32 %s42, 1
        %s240 = smul.addr %s239, 4
        %s241 = scalar_lea.vmem [#allocation3], %s240
        %p242 = pneg %p55
        %p243 = pneg %p52
        %p244 = pneg %p76
        %p245 = pneg %p73
        %p246 = pneg %p97
        %p247 = pneg %p94
        %p248 = pneg %p118
        %p249 = pneg %p115
        %p250 = pneg %p144
        %p251 = pneg %p141
        %s252 = smul.u32 2, %s24
        %p254 = scmp.eq.s32.totalorder %s25, 0
        // Predicated region
        $region49: #{tpu_custom_call.1} parent=35 // pred_check
          %p255 = pneg %p254
        $region50: #{tpu_custom_call.1} parent=35 // pred_check_branch
          %257 = sbr.rel (%p255) target = $region52
        $region51: #{tpu_custom_call.1} parent=35 // pred_region
          %258 = vst [vmem:[#allocation2] sm:$0xf] 0.0
        $region52: #{tpu_custom_call.1} parent=35 // pred_fallthru
          _
        %v259 = vld [vmem:[#allocation6] sm:$0xf]
        %v260 = vld [vmem:[%s224] sm:$0x3]
        %261 = vxpose.xlu0.c.b16.start [1/8] %v260, 128
        %262 = vxpose.xlu0.c.b16.cont [2/8] 0, 128
        %263 = vxpose.xlu0.c.b16.cont [3/8] 0, 128
        %264 = vxpose.xlu0.c.b16.cont [4/8] 0, 128
        %265 = vxpose.xlu0.c.b16.cont [5/8] 0, 128
        %266 = vxpose.xlu0.c.b16.cont [6/8] 0, 128
        %267 = vxpose.xlu0.c.b16.cont [7/8] 0, 128
        %268 = vxpose.xlu0.c.b16.end [8/8] 0, 128
        %v269 = vpop.trf.xlu0
        %v270 = vpop.trf.xlu0
        %v271 = vpop.trf.xlu0
        %v272 = vpop.trf.xlu0
        %v273 = vpop.trf.xlu0
        %v274 = vpop.trf.xlu0
        %v275 = vpop.trf.xlu0
        %v276 = vpop.trf.xlu0
        %v279 = vunpack.c.l.s4 1983009808
        %v280 = vunpack.c.0.s8 %v279
        %v281 = vlaneseq
        %v282 = vshrl.u32 %v281, 7
        %v283 = vsub.s32 %v280, %v282
        %v284 = vrot.slane %v259, %v283
        %v285 = vcombine.high %v284, %v284
        %vm286 = vcmask 31744
        %v288 = vsel %vm286, %v269, 0
        %v291 = vsel %vm286, %v270, 0
        %v294 = vsel %vm286, %v271, 0
        %v297 = vsel %vm286, %v272, 0
        %v300 = vsel %vm286, %v273, 0
        %v303 = vsel %vm286, %v274, 0
        %v306 = vsel %vm286, %v275, 0
        %v309 = vsel %vm286, %v276, 0
        %vm311 = vcmask 1041408
        %v313 = vsel %vm311, %v284, 0
        %v316 = vsel %vm311, %v285, 0
        %318 = vmatprep.subr.bf16.mxu0 %v316
        %319 = vmatpush1.bf16.msra.mxu0 %v313
        %320 = vmatprep.subr.bf16.mxu0 0
        %321 = vmatpush1.bf16.msra.mxu0 0
        %322 = vmatprep.subr.bf16.mxu0 0
        %323 = vmatpush1.bf16.msra.mxu0 0
        %324 = vmatprep.subr.bf16.mxu0 0
        %325 = vmatpush1.bf16.msra.mxu0 0
        %326 = vmatprep.subr.bf16.mxu0 0
        %327 = vmatpush1.bf16.msra.mxu0 0
        %328 = vmatprep.subr.bf16.mxu0 0
        %329 = vmatpush1.bf16.msra.mxu0 0
        %330 = vmatprep.subr.bf16.mxu0 0
        %331 = vmatpush1.bf16.msra.mxu0 0
        %332 = vmatprep.subr.bf16.mxu0 0
        %333 = vmatpush1.bf16.msra.mxu0 0
        %334 = vmatprep.subr.bf16.mxu0 0
        %335 = vmatpush1.bf16.msra.mxu0 0
        %336 = vmatprep.subr.bf16.mxu0 0
        %337 = vmatpush1.bf16.msra.mxu0 0
        %338 = vmatprep.subr.bf16.mxu0 0
        %339 = vmatpush1.bf16.msra.mxu0 0
        %340 = vmatprep.subr.bf16.mxu0 0
        %341 = vmatpush1.bf16.msra.mxu0 0
        %342 = vmatprep.subr.bf16.mxu0 0
        %343 = vmatpush1.bf16.msra.mxu0 0
        %344 = vmatprep.subr.bf16.mxu0 0
        %345 = vmatpush1.bf16.msra.mxu0 0
        %346 = vmatprep.subr.bf16.mxu0 0
        %347 = vmatpush1.bf16.msra.mxu0 0
        %348 = vmatprep.subr.bf16.mxu0 0
        %349 = vmatpush1.bf16.msra.mxu0 0
        %350 = vmatprep.mubr.bf16.mxu0 0
        %351 = vmatmul.mubr.bf16.gmra.mrb[0].mxu0 %v288
        %v352 = vpop.f32.mrb[0].mxu0
        %v353 = vadd.f32 0.0, %v352
        %v354 = vpop.f32.mrb[0].mxu0
        %v355 = vadd.f32 0.0, %v354
        %v356 = vpop.f32.mrb[0].mxu0
        %v357 = vadd.f32 0.0, %v356
        %v358 = vpop.f32.mrb[0].mxu0
        %v359 = vadd.f32 0.0, %v358
        %360 = vmatprep.mubr.bf16.mxu0 0
        %361 = vmatmul.mubr.bf16.gmra.mrb[0].mxu0 %v291
        %v362 = vpop.f32.mrb[0].mxu0
        %v363 = vadd.f32 0.0, %v362
        %v364 = vpop.f32.mrb[0].mxu0
        %v365 = vadd.f32 0.0, %v364
        %v366 = vpop.f32.mrb[0].mxu0
        %v367 = vadd.f32 0.0, %v366
        %v368 = vpop.f32.mrb[0].mxu0
        %v369 = vadd.f32 0.0, %v368
        %370 = vmatprep.mubr.bf16.mxu0 0
        %371 = vmatmul.mubr.bf16.gmra.mrb[0].mxu0 %v294
        %v372 = vpop.f32.mrb[0].mxu0
        %v373 = vadd.f32 0.0, %v372
        %v374 = vpop.f32.mrb[0].mxu0
        %v375 = vadd.f32 0.0, %v374
        %v376 = vpop.f32.mrb[0].mxu0
        %v377 = vadd.f32 0.0, %v376
        %v378 = vpop.f32.mrb[0].mxu0
        %v379 = vadd.f32 0.0, %v378
        %380 = vmatprep.mubr.bf16.mxu0 0
        %381 = vmatmul.mubr.bf16.gmra.mrb[0].mxu0 %v297
        %v382 = vpop.f32.mrb[0].mxu0
        %v383 = vadd.f32 0.0, %v382
        %v384 = vpop.f32.mrb[0].mxu0
        %v385 = vadd.f32 0.0, %v384
        %v386 = vpop.f32.mrb[0].mxu0
        %v387 = vadd.f32 0.0, %v386
        %v388 = vpop.f32.mrb[0].mxu0
        %v389 = vadd.f32 0.0, %v388
        %390 = vmatprep.mubr.bf16.mxu0 0
        %391 = vmatmul.mubr.bf16.gmra.mrb[0].mxu0 %v300
        %v392 = vpop.f32.mrb[0].mxu0
        %v393 = vadd.f32 0.0, %v392
        %v394 = vpop.f32.mrb[0].mxu0
        %v395 = vadd.f32 0.0, %v394
        %v396 = vpop.f32.mrb[0].mxu0
        %v397 = vadd.f32 0.0, %v396
        %v398 = vpop.f32.mrb[0].mxu0
        %v399 = vadd.f32 0.0, %v398
        %400 = vmatprep.mubr.bf16.mxu0 0
        %401 = vmatmul.mubr.bf16.gmra.mrb[0].mxu0 %v303
        %v402 = vpop.f32.mrb[0].mxu0
        %v403 = vadd.f32 0.0, %v402
        %v404 = vpop.f32.mrb[0].mxu0
        %v405 = vadd.f32 0.0, %v404
        %v406 = vpop.f32.mrb[0].mxu0
        %v407 = vadd.f32 0.0, %v406
        %v408 = vpop.f32.mrb[0].mxu0
        %v409 = vadd.f32 0.0, %v408
        %410 = vmatprep.mubr.bf16.mxu0 0
        %411 = vmatmul.mubr.bf16.gmra.mrb[0].mxu0 %v306
        %v412 = vpop.f32.mrb[0].mxu0
        %v413 = vadd.f32 0.0, %v412
        %v414 = vpop.f32.mrb[0].mxu0
        %v415 = vadd.f32 0.0, %v414
        %v416 = vpop.f32.mrb[0].mxu0
        %v417 = vadd.f32 0.0, %v416
        %v418 = vpop.f32.mrb[0].mxu0
        %v419 = vadd.f32 0.0, %v418
        %420 = vmatprep.mubr.bf16.mxu0 0
        %421 = vmatmul.mubr.bf16.gmra.mrb[0].mxu0 %v309
        %v422 = vpop.f32.mrb[0].mxu0
        %v423 = vadd.f32 0.0, %v422
        %v424 = vpop.f32.mrb[0].mxu0
        %v425 = vadd.f32 0.0, %v424
        %v426 = vpop.f32.mrb[0].mxu0
        %v427 = vadd.f32 0.0, %v426
        %v428 = vpop.f32.mrb[0].mxu0
        %v429 = vadd.f32 0.0, %v428
        %430 = vdwg.mxu0
        %v431 = vmul.f32 %v353, 0.5
        %v432 = vmul.f32 %v355, 0.5
        %v433 = vmul.f32 %v357, 0.5
        %v434 = vmul.f32 %v359, 0.5
        %v435 = vmul.f32 %v363, 0.5
        %v436 = vmul.f32 %v365, 0.5
        %v437 = vmul.f32 %v367, 0.5
        %v438 = vmul.f32 %v369, 0.5
        %v439 = vmul.f32 %v373, 0.5
        %v440 = vmul.f32 %v375, 0.5
        %v441 = vmul.f32 %v377, 0.5
        %v442 = vmul.f32 %v379, 0.5
        %v443 = vmul.f32 %v383, 0.5
        %v444 = vmul.f32 %v385, 0.5
        %v445 = vmul.f32 %v387, 0.5
        %v446 = vmul.f32 %v389, 0.5
        %v447 = vmul.f32 %v393, 0.5
        %v448 = vmul.f32 %v395, 0.5
        %v449 = vmul.f32 %v397, 0.5
        %v450 = vmul.f32 %v399, 0.5
        %v451 = vmul.f32 %v403, 0.5
        %v452 = vmul.f32 %v405, 0.5
        %v453 = vmul.f32 %v407, 0.5
        %v454 = vmul.f32 %v409, 0.5
        %v455 = vmul.f32 %v413, 0.5
        %v456 = vmul.f32 %v415, 0.5
        %v457 = vmul.f32 %v417, 0.5
        %v458 = vmul.f32 %v419, 0.5
        %v459 = vmul.f32 %v423, 0.5
        %v460 = vmul.f32 %v425, 0.5
        %v461 = vmul.f32 %v427, 0.5
        %v462 = vmul.f32 %v429, 0.5
        %v463 = vtanh.pop %v431
        %v464 = vtanh.pop %v432
        %v465 = vtanh.pop %v433
        %v466 = vtanh.pop %v434
        %v467 = vtanh.pop %v435
        %v468 = vtanh.pop %v436
        %v469 = vtanh.pop %v437
        %v470 = vtanh.pop %v438
        %v471 = vtanh.pop %v439
        %v472 = vtanh.pop %v440
        %v473 = vtanh.pop %v441
        %v474 = vtanh.pop %v442
        %v475 = vtanh.pop %v443
        %v476 = vtanh.pop %v444
        %v477 = vtanh.pop %v445
        %v478 = vtanh.pop %v446
        %v479 = vtanh.pop %v447
        %v480 = vtanh.pop %v448
        %v481 = vtanh.pop %v449
        %v482 = vtanh.pop %v450
        %v483 = vtanh.pop %v451
        %v484 = vtanh.pop %v452
        %v485 = vtanh.pop %v453
        %v486 = vtanh.pop %v454
        %v487 = vtanh.pop %v455
        %v488 = vtanh.pop %v456
        %v489 = vtanh.pop %v457
        %v490 = vtanh.pop %v458
        %v491 = vtanh.pop %v459
        %v492 = vtanh.pop %v460
        %v493 = vtanh.pop %v461
        %v494 = vtanh.pop %v462
        %v495 = vadd.f32 %v463, 1.0
        %v496 = vadd.f32 %v464, 1.0
        %v497 = vadd.f32 %v465, 1.0
        %v498 = vadd.f32 %v466, 1.0
        %v499 = vadd.f32 %v467, 1.0
        %v500 = vadd.f32 %v468, 1.0
        %v501 = vadd.f32 %v469, 1.0
        %v502 = vadd.f32 %v470, 1.0
        %v503 = vadd.f32 %v471, 1.0
        %v504 = vadd.f32 %v472, 1.0
        %v505 = vadd.f32 %v473, 1.0
        %v506 = vadd.f32 %v474, 1.0
        %v507 = vadd.f32 %v475, 1.0
        %v508 = vadd.f32 %v476, 1.0
        %v509 = vadd.f32 %v477, 1.0
        %v510 = vadd.f32 %v478, 1.0
        %v511 = vadd.f32 %v479, 1.0
        %v512 = vadd.f32 %v480, 1.0
        %v513 = vadd.f32 %v481, 1.0
        %v514 = vadd.f32 %v482, 1.0
        %v515 = vadd.f32 %v483, 1.0
        %v516 = vadd.f32 %v484, 1.0
        %v517 = vadd.f32 %v485, 1.0
        %v518 = vadd.f32 %v486, 1.0
        %v519 = vadd.f32 %v487, 1.0
        %v520 = vadd.f32 %v488, 1.0
        %v521 = vadd.f32 %v489, 1.0
        %v522 = vadd.f32 %v490, 1.0
        %v523 = vadd.f32 %v491, 1.0
        %v524 = vadd.f32 %v492, 1.0
        %v525 = vadd.f32 %v493, 1.0
        %v526 = vadd.f32 %v494, 1.0
        %v527 = vmul.f32 %v431, %v495
        %v528 = vmul.f32 %v432, %v496
        %v529 = vmul.f32 %v433, %v497
        %v530 = vmul.f32 %v434, %v498
        %v531 = vmul.f32 %v435, %v499
        %v532 = vmul.f32 %v436, %v500
        %v533 = vmul.f32 %v437, %v501
        %v534 = vmul.f32 %v438, %v502
        %v535 = vmul.f32 %v439, %v503
        %v536 = vmul.f32 %v440, %v504
        %v537 = vmul.f32 %v441, %v505
        %v538 = vmul.f32 %v442, %v506
        %v539 = vmul.f32 %v443, %v507
        %v540 = vmul.f32 %v444, %v508
        %v541 = vmul.f32 %v445, %v509
        %v542 = vmul.f32 %v446, %v510
        %v543 = vmul.f32 %v447, %v511
        %v544 = vmul.f32 %v448, %v512
        %v545 = vmul.f32 %v449, %v513
        %v546 = vmul.f32 %v450, %v514
        %v547 = vmul.f32 %v451, %v515
        %v548 = vmul.f32 %v452, %v516
        %v549 = vmul.f32 %v453, %v517
        %v550 = vmul.f32 %v454, %v518
        %v551 = vmul.f32 %v455, %v519
        %v552 = vmul.f32 %v456, %v520
        %v553 = vmul.f32 %v457, %v521
        %v554 = vmul.f32 %v458, %v522
        %v555 = vmul.f32 %v459, %v523
        %v556 = vmul.f32 %v460, %v524
        %v557 = vmul.f32 %v461, %v525
        %v558 = vmul.f32 %v462, %v526
        %v559 = vld [vmem:[#allocation2] ss:$2 sm:$0x3]
        %v560 = vadd.f32 %v527, %v529
        %v561 = vadd.f32 %v560, %v531
        %v562 = vadd.f32 %v561, %v533
        %v563 = vadd.f32 %v562, %v535
        %v564 = vadd.f32 %v563, %v537
        %v565 = vadd.f32 %v564, %v539
        %v566 = vadd.f32 %v565, %v541
        %v567 = vadd.f32 %v566, %v543
        %v568 = vadd.f32 %v567, %v545
        %v569 = vadd.f32 %v568, %v547
        %v570 = vadd.f32 %v569, %v549
        %v571 = vadd.f32 %v570, %v551
        %v572 = vadd.f32 %v571, %v553
        %v573 = vadd.f32 %v572, %v555
        %v574 = vadd.f32 %v573, %v557
        %v575 = vrot.slane %v574, 4
        %v576 = vadd.f32 %v574, %v575
        %v577 = vrot.slane %v576, 2
        %v578 = vadd.f32 %v576, %v577
        %v579 = vrot.slane %v578, 1
        %v580 = vadd.f32 %v578, %v579
        %v581 = vadd.f32 %v528, %v530
        %v582 = vadd.f32 %v581, %v532
        %v583 = vadd.f32 %v582, %v534
        %v584 = vadd.f32 %v583, %v536
        %v585 = vadd.f32 %v584, %v538
        %v586 = vadd.f32 %v585, %v540
        %v587 = vadd.f32 %v586, %v542
        %v588 = vadd.f32 %v587, %v544
        %v589 = vadd.f32 %v588, %v546
        %v590 = vadd.f32 %v589, %v548
        %v591 = vadd.f32 %v590, %v550
        %v592 = vadd.f32 %v591, %v552
        %v593 = vadd.f32 %v592, %v554
        %v594 = vadd.f32 %v593, %v556
        %v595 = vadd.f32 %v594, %v558
        %v596 = vrot.slane %v595, 4
        %v597 = vadd.f32 %v595, %v596
        %v598 = vrot.slane %v597, 2
        %v599 = vadd.f32 %v597, %v598
        %v600 = vrot.slane %v599, 1
        %v601 = vadd.f32 %v599, %v600
        %v604 = vcombine.low %v580, %v601
        %v606 = vunpack.c.l.s4 1966171168
        %v607 = vunpack.c.0.s8 %v606
        %v608 = vlaneseq
        %v609 = vshrl.u32 %v608, 7
        %v610 = vsub.s32 %v607, %v609
        %v611 = vrot.slane %v604, %v610
        %v613 = vunpack.c.l.s4 1966171168
        %v614 = vunpack.c.0.s8 %v613
        %v615 = vlaneseq
        %v616 = vshrl.u32 %v615, 7
        %v617 = vsub.s32 %v614, %v616
        %v618 = vrot.slane %v611, %v617
        %v620 = vadd.f32 %v559, %v618
        %v621 = vlaneseq
        %vm622 = vcmp.ge.s32.totalorder %v621, 0
        %vm623 = vcmp.lt.s32.totalorder %v621, 256
        %vm624 = vmand %vm622, %vm623
        %625 = vst.msk [vmem:[#allocation2] ss:$2 sm:$0x3] %vm624, %v620
        %s626 = scalar_lea.vmem %s224, 2 [#allocation3]
        %v627 = vld [vmem:[%s626] sm:$0x3]
        %628 = vxpose.xlu0.c.b16.start [1/8] %v627, 128
        %629 = vxpose.xlu0.c.b16.cont [2/8] 0, 128
        %630 = vxpose.xlu0.c.b16.cont [3/8] 0, 128
        %631 = vxpose.xlu0.c.b16.cont [4/8] 0, 128
        %632 = vxpose.xlu0.c.b16.cont [5/8] 0, 128
        %633 = vxpose.xlu0.c.b16.cont [6/8] 0, 128
        %634 = vxpose.xlu0.c.b16.cont [7/8] 0, 128
        %635 = vxpose.xlu0.c.b16.end [8/8] 0, 128
        %v636 = vpop.trf.xlu0
        %v637 = vpop.trf.xlu0
        %v638 = vpop.trf.xlu0
        %v639 = vpop.trf.xlu0
        %v640 = vpop.trf.xlu0
        %v641 = vpop.trf.xlu0
        %v642 = vpop.trf.xlu0
        %v643 = vpop.trf.xlu0
        %v645 = vsel %vm286, %v636, 0
        %v648 = vsel %vm286, %v637, 0
        %v651 = vsel %vm286, %v638, 0
        %v654 = vsel %vm286, %v639, 0
        %v657 = vsel %vm286, %v640, 0
        %v660 = vsel %vm286, %v641, 0
        %v663 = vsel %vm286, %v642, 0
        %v666 = vsel %vm286, %v643, 0
        %668 = vmatprep.subr.bf16.mxu0 %v316
        %669 = vmatpush1.bf16.msra.mxu0 %v313
        %670 = vmatprep.subr.bf16.mxu0 0
        %671 = vmatpush1.bf16.msra.mxu0 0
        %672 = vmatprep.subr.bf16.mxu0 0
        %673 = vmatpush1.bf16.msra.mxu0 0
        %674 = vmatprep.subr.bf16.mxu0 0
        %675 = vmatpush1.bf16.msra.mxu0 0
        %676 = vmatprep.subr.bf16.mxu0 0
        %677 = vmatpush1.bf16.msra.mxu0 0
        %678 = vmatprep.subr.bf16.mxu0 0
        %679 = vmatpush1.bf16.msra.mxu0 0
        %680 = vmatprep.subr.bf16.mxu0 0
        %681 = vmatpush1.bf16.msra.mxu0 0
        %682 = vmatprep.subr.bf16.mxu0 0
        %683 = vmatpush1.bf16.msra.mxu0 0
        %684 = vmatprep.subr.bf16.mxu0 0
        %685 = vmatpush1.bf16.msra.mxu0 0
        %686 = vmatprep.subr.bf16.mxu0 0
        %687 = vmatpush1.bf16.msra.mxu0 0
        %688 = vmatprep.subr.bf16.mxu0 0
        %689 = vmatpush1.bf16.msra.mxu0 0
        %690 = vmatprep.subr.bf16.mxu0 0
        %691 = vmatpush1.bf16.msra.mxu0 0
        %692 = vmatprep.subr.bf16.mxu0 0
        %693 = vmatpush1.bf16.msra.mxu0 0
        %694 = vmatprep.subr.bf16.mxu0 0
        %695 = vmatpush1.bf16.msra.mxu0 0
        %696 = vmatprep.subr.bf16.mxu0 0
        %697 = vmatpush1.bf16.msra.mxu0 0
        %698 = vmatprep.subr.bf16.mxu0 0
        %699 = vmatpush1.bf16.msra.mxu0 0
        %700 = vmatprep.mubr.bf16.mxu0 0
        %701 = vmatmul.mubr.bf16.gmra.mrb[0].mxu0 %v645
        %v702 = vpop.f32.mrb[0].mxu0
        %v703 = vadd.f32 0.0, %v702
        %v704 = vpop.f32.mrb[0].mxu0
        %v705 = vadd.f32 0.0, %v704
        %v706 = vpop.f32.mrb[0].mxu0
        %v707 = vadd.f32 0.0, %v706
        %v708 = vpop.f32.mrb[0].mxu0
        %v709 = vadd.f32 0.0, %v708
        %710 = vmatprep.mubr.bf16.mxu0 0
        %711 = vmatmul.mubr.bf16.gmra.mrb[0].mxu0 %v648
        %v712 = vpop.f32.mrb[0].mxu0
        %v713 = vadd.f32 0.0, %v712
        %v714 = vpop.f32.mrb[0].mxu0
        %v715 = vadd.f32 0.0, %v714
        %v716 = vpop.f32.mrb[0].mxu0
        %v717 = vadd.f32 0.0, %v716
        %v718 = vpop.f32.mrb[0].mxu0
        %v719 = vadd.f32 0.0, %v718
        %720 = vmatprep.mubr.bf16.mxu0 0
        %721 = vmatmul.mubr.bf16.gmra.mrb[0].mxu0 %v651
        %v722 = vpop.f32.mrb[0].mxu0
        %v723 = vadd.f32 0.0, %v722
        %v724 = vpop.f32.mrb[0].mxu0
        %v725 = vadd.f32 0.0, %v724
        %v726 = vpop.f32.mrb[0].mxu0
        %v727 = vadd.f32 0.0, %v726
        %v728 = vpop.f32.mrb[0].mxu0
        %v729 = vadd.f32 0.0, %v728
        %730 = vmatprep.mubr.bf16.mxu0 0
        %731 = vmatmul.mubr.bf16.gmra.mrb[0].mxu0 %v654
        %v732 = vpop.f32.mrb[0].mxu0
        %v733 = vadd.f32 0.0, %v732
        %v734 = vpop.f32.mrb[0].mxu0
        %v735 = vadd.f32 0.0, %v734
        %v736 = vpop.f32.mrb[0].mxu0
        %v737 = vadd.f32 0.0, %v736
        %v738 = vpop.f32.mrb[0].mxu0
        %v739 = vadd.f32 0.0, %v738
        %740 = vmatprep.mubr.bf16.mxu0 0
        %741 = vmatmul.mubr.bf16.gmra.mrb[0].mxu0 %v657
        %v742 = vpop.f32.mrb[0].mxu0
        %v743 = vadd.f32 0.0, %v742
        %v744 = vpop.f32.mrb[0].mxu0
        %v745 = vadd.f32 0.0, %v744
        %v746 = vpop.f32.mrb[0].mxu0
        %v747 = vadd.f32 0.0, %v746
        %v748 = vpop.f32.mrb[0].mxu0
        %v749 = vadd.f32 0.0, %v748
        %750 = vmatprep.mubr.bf16.mxu0 0
        %751 = vmatmul.mubr.bf16.gmra.mrb[0].mxu0 %v660
        %v752 = vpop.f32.mrb[0].mxu0
        %v753 = vadd.f32 0.0, %v752
        %v754 = vpop.f32.mrb[0].mxu0
        %v755 = vadd.f32 0.0, %v754
        %v756 = vpop.f32.mrb[0].mxu0
        %v757 = vadd.f32 0.0, %v756
        %v758 = vpop.f32.mrb[0].mxu0
        %v759 = vadd.f32 0.0, %v758
        %760 = vmatprep.mubr.bf16.mxu0 0
        %761 = vmatmul.mubr.bf16.gmra.mrb[0].mxu0 %v663
        %v762 = vpop.f32.mrb[0].mxu0
        %v763 = vadd.f32 0.0, %v762
        %v764 = vpop.f32.mrb[0].mxu0
        %v765 = vadd.f32 0.0, %v764
        %v766 = vpop.f32.mrb[0].mxu0
        %v767 = vadd.f32 0.0, %v766
        %v768 = vpop.f32.mrb[0].mxu0
        %v769 = vadd.f32 0.0, %v768
        %770 = vmatprep.mubr.bf16.mxu0 0
        %771 = vmatmul.mubr.bf16.gmra.mrb[0].mxu0 %v666
        %v772 = vpop.f32.mrb[0].mxu0
        %v773 = vadd.f32 0.0, %v772
        %v774 = vpop.f32.mrb[0].mxu0
        %v775 = vadd.f32 0.0, %v774
        %v776 = vpop.f32.mrb[0].mxu0
        %v777 = vadd.f32 0.0, %v776
        %v778 = vpop.f32.mrb[0].mxu0
        %v779 = vadd.f32 0.0, %v778
        %780 = vdwg.mxu0
        %v781 = vmul.f32 %v703, 0.5
        %v782 = vmul.f32 %v705, 0.5
        %v783 = vmul.f32 %v707, 0.5
        %v784 = vmul.f32 %v709, 0.5
        %v785 = vmul.f32 %v713, 0.5
        %v786 = vmul.f32 %v715, 0.5
        %v787 = vmul.f32 %v717, 0.5
        %v788 = vmul.f32 %v719, 0.5
        %v789 = vmul.f32 %v723, 0.5
        %v790 = vmul.f32 %v725, 0.5
        %v791 = vmul.f32 %v727, 0.5
        %v792 = vmul.f32 %v729, 0.5
        %v793 = vmul.f32 %v733, 0.5
        %v794 = vmul.f32 %v735, 0.5
        %v795 = vmul.f32 %v737, 0.5
        %v796 = vmul.f32 %v739, 0.5
        %v797 = vmul.f32 %v743, 0.5
        %v798 = vmul.f32 %v745, 0.5
        %v799 = vmul.f32 %v747, 0.5
        %v800 = vmul.f32 %v749, 0.5
        %v801 = vmul.f32 %v753, 0.5
        %v802 = vmul.f32 %v755, 0.5
        %v803 = vmul.f32 %v757, 0.5
        %v804 = vmul.f32 %v759, 0.5
        %v805 = vmul.f32 %v763, 0.5
        %v806 = vmul.f32 %v765, 0.5
        %v807 = vmul.f32 %v767, 0.5
        %v808 = vmul.f32 %v769, 0.5
        %v809 = vmul.f32 %v773, 0.5
        %v810 = vmul.f32 %v775, 0.5
        %v811 = vmul.f32 %v777, 0.5
        %v812 = vmul.f32 %v779, 0.5
        %v813 = vtanh.pop %v781
        %v814 = vtanh.pop %v782
        %v815 = vtanh.pop %v783
        %v816 = vtanh.pop %v784
        %v817 = vtanh.pop %v785
        %v818 = vtanh.pop %v786
        %v819 = vtanh.pop %v787
        %v820 = vtanh.pop %v788
        %v821 = vtanh.pop %v789
        %v822 = vtanh.pop %v790
        %v823 = vtanh.pop %v791
        %v824 = vtanh.pop %v792
        %v825 = vtanh.pop %v793
        %v826 = vtanh.pop %v794
        %v827 = vtanh.pop %v795
        %v828 = vtanh.pop %v796
        %v829 = vtanh.pop %v797
        %v830 = vtanh.pop %v798
        %v831 = vtanh.pop %v799
        %v832 = vtanh.pop %v800
        %v833 = vtanh.pop %v801
        %v834 = vtanh.pop %v802
        %v835 = vtanh.pop %v803
        %v836 = vtanh.pop %v804
        %v837 = vtanh.pop %v805
        %v838 = vtanh.pop %v806
        %v839 = vtanh.pop %v807
        %v840 = vtanh.pop %v808
        %v841 = vtanh.pop %v809
        %v842 = vtanh.pop %v810
        %v843 = vtanh.pop %v811
        %v844 = vtanh.pop %v812
        %v845 = vadd.f32 %v813, 1.0
        %v846 = vadd.f32 %v814, 1.0
        %v847 = vadd.f32 %v815, 1.0
        %v848 = vadd.f32 %v816, 1.0
        %v849 = vadd.f32 %v817, 1.0
        %v850 = vadd.f32 %v818, 1.0
        %v851 = vadd.f32 %v819, 1.0
        %v852 = vadd.f32 %v820, 1.0
        %v853 = vadd.f32 %v821, 1.0
        %v854 = vadd.f32 %v822, 1.0
        %v855 = vadd.f32 %v823, 1.0
        %v856 = vadd.f32 %v824, 1.0
        %v857 = vadd.f32 %v825, 1.0
        %v858 = vadd.f32 %v826, 1.0
        %v859 = vadd.f32 %v827, 1.0
        %v860 = vadd.f32 %v828, 1.0
        %v861 = vadd.f32 %v829, 1.0
        %v862 = vadd.f32 %v830, 1.0
        %v863 = vadd.f32 %v831, 1.0
        %v864 = vadd.f32 %v832, 1.0
        %v865 = vadd.f32 %v833, 1.0
        %v866 = vadd.f32 %v834, 1.0
        %v867 = vadd.f32 %v835, 1.0
        %v868 = vadd.f32 %v836, 1.0
        %v869 = vadd.f32 %v837, 1.0
        %v870 = vadd.f32 %v838, 1.0
        %v871 = vadd.f32 %v839, 1.0
        %v872 = vadd.f32 %v840, 1.0
        %v873 = vadd.f32 %v841, 1.0
        %v874 = vadd.f32 %v842, 1.0
        %v875 = vadd.f32 %v843, 1.0
        %v876 = vadd.f32 %v844, 1.0
        %v877 = vmul.f32 %v781, %v845
        %v878 = vmul.f32 %v782, %v846
        %v879 = vmul.f32 %v783, %v847
        %v880 = vmul.f32 %v784, %v848
        %v881 = vmul.f32 %v785, %v849
        %v882 = vmul.f32 %v786, %v850
        %v883 = vmul.f32 %v787, %v851
        %v884 = vmul.f32 %v788, %v852
        %v885 = vmul.f32 %v789, %v853
        %v886 = vmul.f32 %v790, %v854
        %v887 = vmul.f32 %v791, %v855
        %v888 = vmul.f32 %v792, %v856
        %v889 = vmul.f32 %v793, %v857
        %v890 = vmul.f32 %v794, %v858
        %v891 = vmul.f32 %v795, %v859
        %v892 = vmul.f32 %v796, %v860
        %v893 = vmul.f32 %v797, %v861
        %v894 = vmul.f32 %v798, %v862
        %v895 = vmul.f32 %v799, %v863
        %v896 = vmul.f32 %v800, %v864
        %v897 = vmul.f32 %v801, %v865
        %v898 = vmul.f32 %v802, %v866
        %v899 = vmul.f32 %v803, %v867
        %v900 = vmul.f32 %v804, %v868
        %v901 = vmul.f32 %v805, %v869
        %v902 = vmul.f32 %v806, %v870
        %v903 = vmul.f32 %v807, %v871
        %v904 = vmul.f32 %v808, %v872
        %v905 = vmul.f32 %v809, %v873
        %v906 = vmul.f32 %v810, %v874
        %v907 = vmul.f32 %v811, %v875
        %v908 = vmul.f32 %v812, %v876
        %s909 = scalar_lea.vmem [#allocation2], 1
        %v910 = vld [vmem:[%s909] ss:$2 sm:$0x3]
        %v911 = vadd.f32 %v877, %v879
        %v912 = vadd.f32 %v911, %v881
        %v913 = vadd.f32 %v912, %v883
        %v914 = vadd.f32 %v913, %v885
        %v915 = vadd.f32 %v914, %v887
        %v916 = vadd.f32 %v915, %v889
        %v917 = vadd.f32 %v916, %v891
        %v918 = vadd.f32 %v917, %v893
        %v919 = vadd.f32 %v918, %v895
        %v920 = vadd.f32 %v919, %v897
        %v921 = vadd.f32 %v920, %v899
        %v922 = vadd.f32 %v921, %v901
        %v923 = vadd.f32 %v922, %v903
        %v924 = vadd.f32 %v923, %v905
        %v925 = vadd.f32 %v924, %v907
        %v926 = vrot.slane %v925, 4
        %v927 = vadd.f32 %v925, %v926
        %v928 = vrot.slane %v927, 2
        %v929 = vadd.f32 %v927, %v928
        %v930 = vrot.slane %v929, 1
        %v931 = vadd.f32 %v929, %v930
        %v932 = vadd.f32 %v878, %v880
        %v933 = vadd.f32 %v932, %v882
        %v934 = vadd.f32 %v933, %v884
        %v935 = vadd.f32 %v934, %v886
        %v936 = vadd.f32 %v935, %v888
        %v937 = vadd.f32 %v936, %v890
        %v938 = vadd.f32 %v937, %v892
        %v939 = vadd.f32 %v938, %v894
        %v940 = vadd.f32 %v939, %v896
        %v941 = vadd.f32 %v940, %v898
        %v942 = vadd.f32 %v941, %v900
        %v943 = vadd.f32 %v942, %v902
        %v944 = vadd.f32 %v943, %v904
        %v945 = vadd.f32 %v944, %v906
        %v946 = vadd.f32 %v945, %v908
        %v947 = vrot.slane %v946, 4
        %v948 = vadd.f32 %v946, %v947
        %v949 = vrot.slane %v948, 2
        %v950 = vadd.f32 %v948, %v949
        %v951 = vrot.slane %v950, 1
        %v952 = vadd.f32 %v950, %v951
        %v955 = vcombine.low %v931, %v952
        %v957 = vunpack.c.l.s4 1966171168
        %v958 = vunpack.c.0.s8 %v957
        %v959 = vlaneseq
        %v960 = vshrl.u32 %v959, 7
        %v961 = vsub.s32 %v958, %v960
        %v962 = vrot.slane %v955, %v961
        %v964 = vunpack.c.l.s4 1966171168
        %v965 = vunpack.c.0.s8 %v964
        %v966 = vlaneseq
        %v967 = vshrl.u32 %v966, 7
        %v968 = vsub.s32 %v965, %v967
        %v969 = vrot.slane %v962, %v968
        %v971 = vadd.f32 %v910, %v969
        %972 = vst.msk [vmem:[%s909] ss:$2 sm:$0x3] %vm624, %v971
        %p973 = scmp.eq.s32.totalorder %s25, 1
        // Predicated region
        $region53: #{tpu_custom_call.1} parent=35 // pred_check
          %p974 = pneg %p973
        $region54: #{tpu_custom_call.1} parent=35 // pred_check_branch
          %976 = sbr.rel (%p974) target = $region56
        $region55: #{tpu_custom_call.1} parent=35 // pred_region
          %v977 = vld [vmem:[#allocation2] sm:$0xf]
          %v978 = vmul.f32 %v977, 0.00390625
          %v981 = vunpack.c.l.s4 1983009808
          %v982 = vunpack.c.0.s8 %v981
          %v983 = vlaneseq
          %v984 = vshrl.u32 %v983, 7
          %v985 = vsub.s32 %v982, %v984
          %v986 = vrot.slane %v978, %v985
          %v987 = vcombine.high %v986, %v986
          %v990 = vpack.c.bf16 %v986, %v986
          %v991 = vpack.c.bf16 %v987, %v987
          %v992 = vld [vmem:[#allocation8] sm:$0xf]
          %v993 = vld [vmem:[#allocation8 + $0x4] sm:$0xf]
          %v994 = vld [vmem:[#allocation8 + $0x8] sm:$0xf]
          %v995 = vld [vmem:[#allocation8 + $0xc] sm:$0xf]
          %v996 = vld [vmem:[#allocation8 + $0x10] sm:$0xf]
          %v997 = vld [vmem:[#allocation8 + $0x14] sm:$0xf]
          %v998 = vld [vmem:[#allocation8 + $0x18] sm:$0xf]
          %v999 = vld [vmem:[#allocation8 + $0x1c] sm:$0xf]
          %v1000 = vld [vmem:[#allocation8 + $0x20] sm:$0xf]
          %v1001 = vld [vmem:[#allocation8 + $0x24] sm:$0xf]
          %v1002 = vld [vmem:[#allocation8 + $0x28] sm:$0xf]
          %v1003 = vld [vmem:[#allocation8 + $0x2c] sm:$0xf]
          %v1004 = vld [vmem:[#allocation8 + $0x30] sm:$0xf]
          %v1005 = vld [vmem:[#allocation8 + $0x34] sm:$0xf]
          %v1006 = vld [vmem:[#allocation8 + $0x38] sm:$0xf]
          %v1007 = vld [vmem:[#allocation8 + $0x3c] sm:$0xf]
          %v1008 = vld [vmem:[#allocation8 + $0x40] sm:$0xf]
          %v1009 = vld [vmem:[#allocation8 + $0x44] sm:$0xf]
          %v1010 = vld [vmem:[#allocation8 + $0x48] sm:$0xf]
          %v1011 = vld [vmem:[#allocation8 + $0x4c] sm:$0xf]
          %v1012 = vld [vmem:[#allocation8 + $0x50] sm:$0xf]
          %v1013 = vld [vmem:[#allocation8 + $0x54] sm:$0xf]
          %v1014 = vld [vmem:[#allocation8 + $0x58] sm:$0xf]
          %v1015 = vld [vmem:[#allocation8 + $0x5c] sm:$0xf]
          %v1016 = vld [vmem:[#allocation8 + $0x60] sm:$0xf]
          %v1017 = vld [vmem:[#allocation8 + $0x64] sm:$0xf]
          %v1018 = vld [vmem:[#allocation8 + $0x68] sm:$0xf]
          %v1019 = vld [vmem:[#allocation8 + $0x6c] sm:$0xf]
          %v1020 = vld [vmem:[#allocation8 + $0x70] sm:$0xf]
          %v1021 = vld [vmem:[#allocation8 + $0x74] sm:$0xf]
          %v1022 = vld [vmem:[#allocation8 + $0x78] sm:$0xf]
          %v1023 = vld [vmem:[#allocation8 + $0x7c] sm:$0xf]
          %v1024 = vld [vmem:[%s3] sm:$0x1]
          %v1026 = vlaneseq
          %v1027 = vshrl.u32 %v1026, 7
          %v1028 = vsub.s32 0, %v1027
          %v1029 = vrot.slane %v1024, %v1028
          %v1063 = vunpack.c.l.b16 %v992
          %v1064 = vunpack.c.l.b16 %v993
          %v1065 = vunpack.c.l.b16 %v994
          %v1066 = vunpack.c.l.b16 %v995
          %v1067 = vunpack.c.l.b16 %v996
          %v1068 = vunpack.c.l.b16 %v997
          %v1069 = vunpack.c.l.b16 %v998
          %v1070 = vunpack.c.l.b16 %v999
          %v1071 = vunpack.c.l.b16 %v1000
          %v1072 = vunpack.c.l.b16 %v1001
          %v1073 = vunpack.c.l.b16 %v1002
          %v1074 = vunpack.c.l.b16 %v1003
          %v1075 = vunpack.c.l.b16 %v1004
          %v1076 = vunpack.c.l.b16 %v1005
          %v1077 = vunpack.c.l.b16 %v1006
          %v1078 = vunpack.c.l.b16 %v1007
          %v1079 = vunpack.c.l.b16 %v1008
          %v1080 = vunpack.c.l.b16 %v1009
          %v1081 = vunpack.c.l.b16 %v1010
          %v1082 = vunpack.c.l.b16 %v1011
          %v1083 = vunpack.c.l.b16 %v1012
          %v1084 = vunpack.c.l.b16 %v1013
          %v1085 = vunpack.c.l.b16 %v1014
          %v1086 = vunpack.c.l.b16 %v1015
          %v1087 = vunpack.c.l.b16 %v1016
          %v1088 = vunpack.c.l.b16 %v1017
          %v1089 = vunpack.c.l.b16 %v1018
          %v1090 = vunpack.c.l.b16 %v1019
          %v1091 = vunpack.c.l.b16 %v1020
          %v1092 = vunpack.c.l.b16 %v1021
          %v1093 = vunpack.c.l.b16 %v1022
          %v1094 = vunpack.c.l.b16 %v1023
          %v1095 = vpack.c.b16 %v1064, %v1063
          %v1096 = vpack.c.b16 %v1066, %v1065
          %v1097 = vpack.c.b16 %v1068, %v1067
          %v1098 = vpack.c.b16 %v1070, %v1069
          %v1099 = vpack.c.b16 %v1072, %v1071
          %v1100 = vpack.c.b16 %v1074, %v1073
          %v1101 = vpack.c.b16 %v1076, %v1075
          %v1102 = vpack.c.b16 %v1078, %v1077
          %v1103 = vpack.c.b16 %v1080, %v1079
          %v1104 = vpack.c.b16 %v1082, %v1081
          %v1105 = vpack.c.b16 %v1084, %v1083
          %v1106 = vpack.c.b16 %v1086, %v1085
          %v1107 = vpack.c.b16 %v1088, %v1087
          %v1108 = vpack.c.b16 %v1090, %v1089
          %v1109 = vpack.c.b16 %v1092, %v1091
          %v1110 = vpack.c.b16 %v1094, %v1093
          %1127 = vmatprep.subr.bf16.mxu0 0
          %1128 = vmatpush1.bf16.msra.mxu0 %v1095
          %1129 = vmatprep.subr.bf16.mxu0 0
          %1130 = vmatpush1.bf16.msra.mxu0 %v1096
          %1131 = vmatprep.subr.bf16.mxu0 0
          %1132 = vmatpush1.bf16.msra.mxu0 %v1097
          %1133 = vmatprep.subr.bf16.mxu0 0
          %1134 = vmatpush1.bf16.msra.mxu0 %v1098
          %1135 = vmatprep.subr.bf16.mxu0 0
          %1136 = vmatpush1.bf16.msra.mxu0 %v1099
          %1137 = vmatprep.subr.bf16.mxu0 0
          %1138 = vmatpush1.bf16.msra.mxu0 %v1100
          %1139 = vmatprep.subr.bf16.mxu0 0
          %1140 = vmatpush1.bf16.msra.mxu0 %v1101
          %1141 = vmatprep.subr.bf16.mxu0 0
          %1142 = vmatpush1.bf16.msra.mxu0 %v1102
          %1143 = vmatprep.subr.bf16.mxu0 0
          %1144 = vmatpush1.bf16.msra.mxu0 %v1103
          %1145 = vmatprep.subr.bf16.mxu0 0
          %1146 = vmatpush1.bf16.msra.mxu0 %v1104
          %1147 = vmatprep.subr.bf16.mxu0 0
          %1148 = vmatpush1.bf16.msra.mxu0 %v1105
          %1149 = vmatprep.subr.bf16.mxu0 0
          %1150 = vmatpush1.bf16.msra.mxu0 %v1106
          %1151 = vmatprep.subr.bf16.mxu0 0
          %1152 = vmatpush1.bf16.msra.mxu0 %v1107
          %1153 = vmatprep.subr.bf16.mxu0 0
          %1154 = vmatpush1.bf16.msra.mxu0 %v1108
          %1155 = vmatprep.subr.bf16.mxu0 0
          %1156 = vmatpush1.bf16.msra.mxu0 %v1109
          %1157 = vmatprep.subr.bf16.mxu0 0
          %1158 = vmatpush1.bf16.msra.mxu0 %v1110
          %1159 = vmatprep.mubr.bf16.mxu0 %v991
          %1160 = vmatmul.mubr.bf16.gmra.mrb[0].mxu0 %v990
          %v1161 = vpop.f32.mrb[0].mxu0
          %v1162 = vadd.f32 %v1029, %v1161
          %v1163 = vpop.f32.mrb[0].mxu0
          %v1164 = vpop.f32.mrb[0].mxu0
          %v1165 = vpop.f32.mrb[0].mxu0
          %1166 = vdwg.mxu0
          %1167 = vst [vmem:[#allocation9] sm:$0x3] %v1162
        $region56: #{tpu_custom_call.1} parent=35 // pred_fallthru
          _
        // Predicated region
        $region57: #{tpu_custom_call.1} parent=35 // pred_check
          %p1168 = pneg %p141
        $region58: #{tpu_custom_call.1} parent=35 // pred_check_branch
          %1170 = sbr.rel (%p1168) target = $region60
        $region59: #{tpu_custom_call.1} parent=35 // pred_region
          %s1172 = ssub.s32 32, 32
          %1173 = vsyncadd [#allocation5], %s1172
          %s1174 = smul.addr %s24, 32
          %s1175 = scalar_lea.hbm %s4, %s1174
          %s1177 = sshll.u32 [#allocation9], 4
          %s1178 = int_to_ptr.vmem [resolvable:$true] %s1177
          %1180 = dma.vmem_to_hbm [thread:$0]  %s1178, 32, %s1175, [#allocation5]
        $region60: #{tpu_custom_call.1} parent=35 // pred_fallthru
          _
        // Predicated region
        $region61: #{tpu_custom_call.1} parent=35 // pred_check
          %p1181 = pneg %p141
        $region62: #{tpu_custom_call.1} parent=35 // pred_check_branch
          %1183 = sbr.rel (%p1181) target = $region64
        $region63: #{tpu_custom_call.1} parent=35 // pred_region
          %1184 = dma.done [#allocation5], 32
        $region64: #{tpu_custom_call.1} parent=35 // pred_fallthru
          _
      $region36: #{tpu_custom_call.1} parent=5 // pred_fallthru
        _
      %p1185 = scmp.le.s32.totalorder 2, %s15
      // Predicated region
      $region65: #{tpu_custom_call.1} parent=5 // pred_check
        %p1186 = pneg %p1185
      $region66: #{tpu_custom_call.1} parent=5 // pred_check_branch
        %1188 = sbr.rel (%p1186) target = $region68
      $region67: #{tpu_custom_call.1} parent=5 // pred_region
        %s1189 = ssub.s32 %s15, 2
      $region68: #{tpu_custom_call.1} parent=5 // pred_fallthru
        _
    $region6: #{tpu_custom_call.1} parent=1 // loop_footer
      %s19 = sadd.s32 1, %s15
    $region7: #{tpu_custom_call.1} parent=1 // loop_footer_branch
      %14 = sbr.rel target = $region3
    $region8: #{tpu_custom_call.1} parent=1 // loop_exit
      _
    %1190 = vsyncpa [#allocation4], 1
    %s1191 = scalar_lea.sflag [#allocation4], 1
    %1192 = vsyncpa %s1191, 1
    %1193 = vsyncpa [#allocation7], 1
    %1194 = vsyncpa [#allocation5], 1
    %s1195 = scalar_lea.sflag [#allocation5], 1
    %1196 = vsyncpa %s1195, 1

</llo_original>
